<compile_context>
chip_gen: v5e
topology: v5e:2x2
jax: 0.10.0
libtpu: 0.0.40
codegen_flags: <defaults>
</compile_context>

<pallas_src>
import functools

import jax
import jax.numpy as jnp
from jax.experimental import pallas as pl
from jax.experimental.pallas import tpu as pltpu


# -----------------------------------------------------------------------------
# Generation-aware sizing helpers
# -----------------------------------------------------------------------------
def _vmem_budget_bytes():
    """Scoped-VMEM budget per pallas_call, aware of the chip generation."""
    try:
        cap = int(pltpu.get_tpu_info().vmem_capacity_bytes)
    except Exception:
        return 32 * 1024 * 1024                       # conservative fallback
    if cap <= 64 * 1024 * 1024:                       # v7x: 64 MiB per TC
        return 30 * 1024 * 1024
    return 64 * 1024 * 1024                           # v5e / v6e: 128 MiB parts


def _num_tensorcores():
    try:
        kind = jax.devices()[0].device_kind.lower()
    except Exception:
        return 1
    if any(tag in kind for tag in ("v7", "v4", "v5p")):
        return 2
    return 1


def _pick_tile(P, C, vmem_limit, max_tile):
    """Pick a lane-dense pixel tile TP and the (possibly padded) pixel count.

    Byte-aware: ~12 f32-equivalent (C, TP) slabs are live at once in the fuse
    kernel (double/triple-buffered x/y/out blocks plus in-kernel f32 temps).
    Returns (TP, P_pad). P_pad > P only when P exceeds the budget and has no
    128-multiple divisor (ragged case -> zero-padded, kernel-masked tail).
    """
    cap = int(0.8 * vmem_limit) // (12 * C * 4)
    cap = max(128, min((cap // 128) * 128, max_tile))
    if P <= cap:
        return P, P                       # whole image in one lane-dense tile
    t = cap
    while t >= 128:
        if P % t == 0:
            return t, P                   # big multiple-of-128 divisor of P
        t -= 128
    p_pad = ((P + cap - 1) // cap) * cap  # ragged: pad tail, mask in-kernel
    return cap, p_pad


def _nearest_flat_indices(H, W, Hy, Wy):
    # PyTorch F.interpolate(mode='nearest'): src = floor(dst * in / out).
    rows = (jnp.arange(H) * Hy) // H
    cols = (jnp.arange(W) * Wy) // W
    return (rows[:, None] * Wy + cols[None, :]).reshape(-1)


# -----------------------------------------------------------------------------
# Kernel A: global sum/max pooling partials over pixels.
#   grid = (B, NS, tiles_per_split).  Per tile we do one lane reduce for the
#   sum and one for the max (XLU slot, hidden under DMA) and accumulate into
#   tiny (C, 1) f32 scratches -- no (C, TP) scratch RMW, so the kernel stays at
#   the HBM roofline.  NS > 1 only on 2-TensorCore chips with B == 1; uneven
#   splits and padded pixel tails are guarded with pl.when / lane masks.
# -----------------------------------------------------------------------------
def _pool_kernel(x_ref, sum_ref, max_ref, sum_sc, max_sc, *,
                 ns, tps, num_tiles, true_p, tile_p):
    t = pl.program_id(2)

    @pl.when(t == 0)
    def _():
        sum_sc[...] = jnp.zeros_like(sum_sc)
        max_sc[...] = jnp.full_like(max_sc, -jnp.inf)

    flat = pl.program_id(1) * tps + t      # global tile index

    def accumulate():
        xf = x_ref[0].astype(jnp.float32)                      # (C, TP)
        if num_tiles * tile_p != true_p:   # padded pixel tail exists (static)
            lane = jax.lax.broadcasted_iota(jnp.int32, xf.shape, 1)
            valid = (flat * tile_p + lane) < true_p
            xmax = jnp.where(valid, xf, -jnp.inf)
        else:
            xmax = xf
        # pad lanes are zero, so the sum needs no mask
        sum_sc[...] += jnp.sum(xf, axis=1, keepdims=True)       # (C, 1)
        max_sc[...] = jnp.maximum(max_sc[...],
                                  jnp.max(xmax, axis=1, keepdims=True))

    if ns * tps > num_tiles:               # uneven split: skip duplicate tiles
        pl.when(flat < num_tiles)(accumulate)
    else:
        accumulate()

    @pl.when(t == tps - 1)
    def _():
        sum_ref[0, 0] = sum_sc[...]
        max_ref[0, 0] = max_sc[...]


# -----------------------------------------------------------------------------
# Kernel B: per-pixel hot path (PagFM + detail, algebraically simplified)
#   x1  = x * w
#   x_k = BN(conv1x1(x1)) ; y_q = BN(conv1x1(y))     (BN folded into W/b; the
#         per-batch channel weights w are folded into W_fx in the wrapper)
#   sim = sigmoid(sum_c(x_k * y_q))
#   out = (1-sim)*x1 + sim*y + x*(1-w)  ==  x + sim*(y - x1)
# -----------------------------------------------------------------------------
def _fuse_kernel(x_ref, y_ref, wts_ref, wfx_ref, bfx_ref, wfy_ref, bfy_ref,
                 out_ref):
    xb = x_ref[0]                                            # (C, TP), x dtype
    yb = y_ref[0]                                            # (C, TP), y dtype

    # bf16 operands feed the MXU natively with f32 accumulation; channel
    # weights are pre-folded into wfx so no (C,TP) x1 temp on the matmul path.
    # TODO(synk): optionally stack f_x/f_y into one block-diagonal (2C,2C) dot
    # if the MXU issue slot ever binds (only plausible on v7x).
    xk = jnp.dot(wfx_ref[0], xb, preferred_element_type=jnp.float32) + bfx_ref[...]
    yq = jnp.dot(wfy_ref[...], yb, preferred_element_type=jnp.float32) + bfy_ref[...]
    sim = jax.nn.sigmoid(jnp.sum(xk * yq, axis=0, keepdims=True))    # (1, TP)

    w = wts_ref[0]                                           # (C, 1) f32
    xf = xb.astype(jnp.float32)
    yf = yb.astype(jnp.float32)
    out_ref[0] = (xf + sim * (yf - xf * w)).astype(out_ref.dtype)


# -----------------------------------------------------------------------------
# Wrapper
# -----------------------------------------------------------------------------
def swfg2_pallas(x_nchw, y_nchw, params, max_tile_pixels=8192,
                 force_pool_splits=None):
    B, C, H, W = x_nchw.shape
    P = H * W
    dt = x_nchw.dtype
    ydt = y_nchw.dtype

    # y at x's resolution, flattened to (B, C, P).  Resize = ONE gather pass;
    # y keeps its own dtype (no wrapper cast pass), the kernel handles it.
    # TODO(synk): for integer scale factors the nearest repeat could be done
    # inside Kernel B from a low-res tile to avoid materializing y_up in HBM.
    Hy, Wy = y_nchw.shape[2], y_nchw.shape[3]
    y = y_nchw.reshape(B, C, Hy * Wy)
    if (Hy, Wy) != (H, W):
        y = jnp.take(y, _nearest_flat_indices(H, W, Hy, Wy), axis=2)
    x = x_nchw.reshape(B, C, P)   # free reshape: channels=sublanes, pixels=lanes

    ncores = _num_tensorcores()
    vmem_limit = _vmem_budget_bytes()

    TP, P_pad = _pick_tile(P, C, vmem_limit, max_tile_pixels)
    num_tiles = P_pad // TP

    # Keep both v7x TensorCores busy when B == 1: never collapse to one tile.
    if B == 1 and ncores >= 2 and num_tiles == 1 and TP % 256 == 0:
        TP //= 2
        num_tiles = P_pad // TP

    if P_pad != P:   # ragged spatial size: zero-pad pixel tail (masked in A)
        x = jnp.pad(x, ((0, 0), (0, 0), (0, P_pad - P)))
        y = jnp.pad(y, ((0, 0), (0, 0), (0, P_pad - P)))

    # Pooling split: only useful to feed a second TensorCore when B == 1.
    if force_pool_splits is not None:
        ns = max(1, min(force_pool_splits, num_tiles))
    elif B == 1 and ncores >= 2 and num_tiles >= 2:
        ns = 2
    else:
        ns = 1
    tps = -(-num_tiles // ns)    # ceil; uneven splits handled in-kernel

    if ns * tps > num_tiles:
        def pool_x_map(b, s, t):   # clamp so duplicate tiles never read OOB
            return (b, 0, jnp.minimum(s * tps + t, num_tiles - 1))
    else:
        def pool_x_map(b, s, t):
            return (b, 0, s * tps + t)

    # --- Kernel A: pooled sum/max partials -----------------------------------
    psum, pmax = pl.pallas_call(
        functools.partial(_pool_kernel, ns=ns, tps=tps, num_tiles=num_tiles,
                          true_p=P, tile_p=TP),
        out_shape=(jax.ShapeDtypeStruct((B, ns, C, 1), jnp.float32),
                   jax.ShapeDtypeStruct((B, ns, C, 1), jnp.float32)),
        grid_spec=pltpu.PrefetchScalarGridSpec(
            num_scalar_prefetch=0,
            grid=(B, ns, tps),
            in_specs=[pl.BlockSpec((1, C, TP), pool_x_map)],
            out_specs=[pl.BlockSpec((1, 1, C, 1), lambda b, s, t: (b, s, 0, 0)),
                       pl.BlockSpec((1, 1, C, 1), lambda b, s, t: (b, s, 0, 0))],
            scratch_shapes=[pltpu.VMEM((C, 1), jnp.float32),
                            pltpu.VMEM((C, 1), jnp.float32)]),
        compiler_params=pltpu.CompilerParams(
            dimension_semantics=("parallel", "parallel", "arbitrary"),
            vmem_limit_bytes=vmem_limit),
    )(x)

    # Combine partials + channel-attention MLP + sigmoid.  O(B*C*M) scalars,
    # done in plain XLA so the pooling grid stays fully parallel.
    mean = jnp.sum(psum[..., 0], axis=1) / float(P)          # (B, C)
    mx = jnp.max(pmax[..., 0], axis=1)                       # (B, C)

    def mlp(v):
        return jnp.maximum(v @ params["mlp_w1"], 0.0) @ params["mlp_w2"]

    wts = jax.nn.sigmoid(mlp(mean) + mlp(mx))                # (B, C) f32

    # Fold the per-batch channel weights into f_x's matrix (tiny (B,C,C)) so
    # Kernel B can feed raw (possibly bf16) x straight to the MXU.
    fx_wb = (params["fx_w"][None, :, :] * wts[:, None, :]).astype(dt)
    fy_w = params["fy_w"].astype(ydt)
    wts_col = wts[:, :, None]                                # (B, C, 1) f32

    # Deeper input pipelining when per-block DMAs are tiny (v7x latency hiding).
    block_bytes = C * TP * max(jnp.dtype(dt).itemsize, jnp.dtype(ydt).itemsize)
    if block_bytes <= 512 * 1024:
        x_spec = pl.BlockSpec((1, C, TP), lambda b, t: (b, 0, t),
                              pipeline_mode=pl.Buffered(3))
        y_spec = pl.BlockSpec((1, C, TP), lambda b, t: (b, 0, t),
                              pipeline_mode=pl.Buffered(3))
    else:
        x_spec = pl.BlockSpec((1, C, TP), lambda b, t: (b, 0, t))
        y_spec = pl.BlockSpec((1, C, TP), lambda b, t: (b, 0, t))

    # --- Kernel B: fused PagFM + detail path ----------------------------------
    out = pl.pallas_call(
        _fuse_kernel,
        out_shape=jax.ShapeDtypeStruct((B, C, P_pad), dt),
        grid_spec=pltpu.PrefetchScalarGridSpec(
            num_scalar_prefetch=0,
            grid=(B, num_tiles),
            in_specs=[
                x_spec,                                            # x
                y_spec,                                            # y
                pl.BlockSpec((1, C, 1), lambda b, t: (b, 0, 0)),   # channel wts
                pl.BlockSpec((1, C, C), lambda b, t: (b, 0, 0)),   # f_x folded W
                pl.BlockSpec((C, 1), lambda b, t: (0, 0)),         # f_x folded b
                pl.BlockSpec((C, C), lambda b, t: (0, 0)),         # f_y folded W
                pl.BlockSpec((C, 1), lambda b, t: (0, 0)),         # f_y folded b
            ],
            out_specs=pl.BlockSpec((1, C, TP), lambda b, t: (b, 0, t)),
        ),
        compiler_params=pltpu.CompilerParams(
            dimension_semantics=("parallel", "parallel"),
            vmem_limit_bytes=vmem_limit),
    )(x, y, wts_col, fx_wb, params["fx_b"], fy_w, params["fy_b"])

    if P_pad != P:
        out = out[:, :, :P]
    return out.reshape(B, C, H, W)


# -----------------------------------------------------------------------------
# Deterministic synthetic parameter init (mirrors the module's __init__ shapes)
# -----------------------------------------------------------------------------
def init_params(key, C, M):
    ks = jax.random.split(key, 12)
    eps = 1e-5

    def rnd(k, shape, s=0.2):
        return (s * jax.random.normal(k, shape)).astype(jnp.float32)

    # mlp: Conv1x1(C->M, no bias), ReLU, Conv1x1(M->C, no bias); stored (Cin, Cout)
    mlp_w1 = rnd(ks[0], (C, M))
    mlp_w2 = rnd(ks[1], (M, C))

    def folded_conv_bn(kw, kg, kb, km, kv):
        wconv = rnd(kw, (C, C))                              # (Cout, Cin)
        gamma = 1.0 + rnd(kg, (C,), 0.1)
        beta = rnd(kb, (C,), 0.1)
        mu = rnd(km, (C,), 0.1)
        var = 0.5 + jax.random.uniform(kv, (C,), jnp.float32)
        scale = gamma / jnp.sqrt(var + eps)
        # fold BN into the conv: scale output rows, bias as (C, 1) column
        return wconv * scale[:, None], (beta - mu * scale)[:, None]

    fx_w, fx_b = folded_conv_bn(ks[2], ks[3], ks[4], ks[5], ks[6])
    fy_w, fy_b = folded_conv_bn(ks[7], ks[8], ks[9], ks[10], ks[11])

    return dict(mlp_w1=mlp_w1, mlp_w2=mlp_w2,
                fx_w=fx_w, fx_b=fx_b, fy_w=fy_w, fy_b=fy_b)


# -----------------------------------------------------------------------------
# Pure-JAX reference mirroring the PyTorch forward (NCHW) for verification
# -----------------------------------------------------------------------------
def swfg2_reference(x, y, params):
    B, C, H, W = x.shape
    if y.shape[2:] != (H, W):
        Hy, Wy = y.shape[2], y.shape[3]
        idx = _nearest_flat_indices(H, W, Hy, Wy)
        y = jnp.take(y.reshape(B, C, Hy * Wy), idx, axis=2).reshape(B, C, H, W)

    gap = x.mean(axis=(2, 3))                                # (B, C)
    mp = x.max(axis=(2, 3))                                  # (B, C)

    def mlp(v):
        return jnp.maximum(v @ params["mlp_w1"], 0.0) @ params["mlp_w2"]

    wts = jax.nn.sigmoid(mlp(gap) + mlp(mp))[:, :, None, None]
    x1 = x * wts
    detail = x * (1.0 - wts)

    xk = jnp.einsum("oi,bihw->bohw", params["fx_w"], x1) \
        + params["fx_b"][None, :, :, None]
    yq = jnp.einsum("oi,bihw->bohw", params["fy_w"], y) \
        + params["fy_b"][None, :, :, None]
    sim = jax.nn.sigmoid(jnp.sum(xk * yq, axis=1, keepdims=True))
    return (1.0 - sim) * x1 + sim * y + detail


if __name__ == "__main__":
    key = jax.random.PRNGKey(0)
    B, C, H, W = 2, 8, 16, 16
    M = 16  # mid_channels of the attention MLP

    kx, ky, ky2, kp, kx2, ky3 = jax.random.split(key, 6)
    x = jax.random.normal(kx, (B, C, H, W), jnp.float32)
    y = jax.random.normal(ky, (B, C, H, W), jnp.float32)
    params = init_params(kp, C, M)

    # 1) f32, same-shape inputs
    out = jax.block_until_ready(swfg2_pallas(x, y, params))
    ref = swfg2_reference(x, y, params)
    assert out.shape == x.shape
    err = float(jnp.max(jnp.abs(out - ref)))
    assert jnp.allclose(out, ref, atol=1e-4, rtol=1e-4), f"f32 max abs err {err}"

    # 2) f32, low-resolution y (exercises the single-gather nearest resize)
    y_lo = jax.random.normal(ky2, (B, C, H // 2, W // 2), jnp.float32)
    out2 = jax.block_until_ready(swfg2_pallas(x, y_lo, params))
    ref2 = swfg2_reference(x, y_lo, params)
    err2 = float(jnp.max(jnp.abs(out2 - ref2)))
    assert jnp.allclose(out2, ref2, atol=1e-4, rtol=1e-4), f"resize max abs err {err2}"

    # 3) bf16 I/O: bf16 operands feed the MXU natively, f32 accumulation
    xb16 = x.astype(jnp.bfloat16)
    yb16 = y.astype(jnp.bfloat16)
    out_bf = jax.block_until_ready(swfg2_pallas(xb16, yb16, params))
    assert out_bf.dtype == jnp.bfloat16
    ref_bf = swfg2_reference(xb16.astype(jnp.float32), yb16.astype(jnp.float32), params)
    err_bf = float(jnp.max(jnp.abs(out_bf.astype(jnp.float32) - ref_bf)))
    assert err_bf < 5e-2, f"bf16 max abs err {err_bf}"

    # 4) ragged spatial size (P=100, not a multiple of 128): whole-image tile
    xr = jax.random.normal(kx2, (1, C, 10, 10), jnp.float32)
    yr = jax.random.normal(ky3, (1, C, 10, 10), jnp.float32)
    out4 = jax.block_until_ready(swfg2_pallas(xr, yr, params))
    ref4 = swfg2_reference(xr, yr, params)
    err4 = float(jnp.max(jnp.abs(out4 - ref4)))
    assert jnp.allclose(out4, ref4, atol=1e-4, rtol=1e-4), f"ragged max abs err {err4}"

    # 5) multi-tile with an uneven 2-way pooling split (v7x B==1 code path)
    xs = jax.random.normal(kx, (1, C, 16, 24), jnp.float32)
    ys = jax.random.normal(ky, (1, C, 16, 24), jnp.float32)
    out5 = jax.block_until_ready(
        swfg2_pallas(xs, ys, params, max_tile_pixels=128, force_pool_splits=2))
    ref5 = swfg2_reference(xs, ys, params)
    err5 = float(jnp.max(jnp.abs(out5 - ref5)))
    assert jnp.allclose(out5, ref5, atol=1e-4, rtol=1e-4), f"split max abs err {err5}"

    # TODO(synk): BatchNorms are implemented in inference (folded) form; PyTorch
    # training-mode batch statistics are not reproduced.
    print("KERNEL_OK")
</pallas_src>

<mosaic_0001>
module attributes {stable_mosaic.version = 11 : i64} {
  func.func @_pool_kernel(%arg0: i32, %arg1: i32, %arg2: i32, %arg3: memref<1x8x256xf32, #tpu.memory_space<vmem>>, %arg4: memref<1x1x8x1xf32, #tpu.memory_space<vmem>>, %arg5: memref<1x1x8x1xf32, #tpu.memory_space<vmem>>, %arg6: memref<8x1xf32, #tpu.memory_space<vmem>>, %arg7: memref<8x1xf32, #tpu.memory_space<vmem>>) attributes {dimension_semantics = [#tpu.dimension_semantics<parallel>, #tpu.dimension_semantics<parallel>, #tpu.dimension_semantics<arbitrary>], iteration_bounds = array<i64: 2, 1, 1>, scalar_prefetch = 0 : i64, scratch_operands = 2 : i64, tpu.core_type = #tpu.core_type<tc>, window_params = [{transform_indices = @transform_0, window_bounds = array<i64: 1, 8, 256>}, {transform_indices = @transform_1, window_bounds = array<i64: 1, 1, 8, 1>}, {transform_indices = @transform_2, window_bounds = array<i64: 1, 1, 8, 1>}]} {
    %c0_i32 = arith.constant 0 : i32
    %0 = arith.cmpi eq, %arg2, %c0_i32 : i32
    %1 = arith.extui %0 : i1 to i32
    %c0_i32_0 = arith.constant 0 : i32
    %2 = arith.cmpi ne, %1, %c0_i32_0 : i32
    scf.if %2 {
      %cst_14 = arith.constant 0.000000e+00 : f32
      %18 = vector.broadcast %cst_14 : f32 to vector<8x1xf32>
      %c0_15 = arith.constant 0 : index
      %c0_16 = arith.constant 0 : index
      %19 = vector.load %arg6[%c0_15, %c0_16] : memref<8x1xf32, #tpu.memory_space<vmem>>, vector<8x1xf32>
      tpu.vector_store %arg6[%c0_15, %c0_16], %18 {strides = array<i32>} : memref<8x1xf32, #tpu.memory_space<vmem>>, vector<8x1xf32>,
      %cst_17 = arith.constant 0xFF800000 : f32
      %20 = vector.broadcast %cst_17 : f32 to vector<8x1xf32>
      %c0_18 = arith.constant 0 : index
      %c0_19 = arith.constant 0 : index
      %21 = vector.load %arg7[%c0_18, %c0_19] : memref<8x1xf32, #tpu.memory_space<vmem>>, vector<8x1xf32>
      tpu.vector_store %arg7[%c0_18, %c0_19], %20 {strides = array<i32>} : memref<8x1xf32, #tpu.memory_space<vmem>>, vector<8x1xf32>,
    } else {
    }
    %c0 = arith.constant 0 : index
    %c0_1 = arith.constant 0 : index
    %c0_2 = arith.constant 0 : index
    %3 = vector.load %arg3[%c0, %c0_1, %c0_2] : memref<1x8x256xf32, #tpu.memory_space<vmem>>, vector<1x8x256xf32>
    %4 = vector.shape_cast %3 : vector<1x8x256xf32> to vector<8x256xf32>
    %c0_3 = arith.constant 0 : index
    %c0_4 = arith.constant 0 : index
    %5 = vector.load %arg6[%c0_3, %c0_4] : memref<8x1xf32, #tpu.memory_space<vmem>>, vector<8x1xf32>
    %cst = arith.constant dense<0.000000e+00> : vector<8xf32>
    %6 = vector.multi_reduction <add>, %4, %cst [1] : vector<8x256xf32> to vector<8xf32>
    %7 = vector.shape_cast %6 : vector<8xf32> to vector<8x1xf32>
    %8 = arith.addf %5, %7 : vector<8x1xf32>
    %c0_5 = arith.constant 0 : index
    %c0_6 = arith.constant 0 : index
    %9 = vector.load %arg6[%c0_5, %c0_6] : memref<8x1xf32, #tpu.memory_space<vmem>>, vector<8x1xf32>
    tpu.vector_store %arg6[%c0_5, %c0_6], %8 {strides = array<i32>} : memref<8x1xf32, #tpu.memory_space<vmem>>, vector<8x1xf32>,
    %c0_7 = arith.constant 0 : index
    %c0_8 = arith.constant 0 : index
    %10 = vector.load %arg7[%c0_7, %c0_8] : memref<8x1xf32, #tpu.memory_space<vmem>>, vector<8x1xf32>
    %cst_9 = arith.constant dense<0xFF800000> : vector<8xf32>
    %11 = vector.multi_reduction <maximumf>, %4, %cst_9 [1] : vector<8x256xf32> to vector<8xf32>
    %12 = vector.shape_cast %11 : vector<8xf32> to vector<8x1xf32>
    %13 = arith.maximumf %10, %12 : vector<8x1xf32>
    %c0_10 = arith.constant 0 : index
    %c0_11 = arith.constant 0 : index
    %14 = vector.load %arg7[%c0_10, %c0_11] : memref<8x1xf32, #tpu.memory_space<vmem>>, vector<8x1xf32>
    tpu.vector_store %arg7[%c0_10, %c0_11], %13 {strides = array<i32>} : memref<8x1xf32, #tpu.memory_space<vmem>>, vector<8x1xf32>,
    %c0_i32_12 = arith.constant 0 : i32
    %15 = arith.cmpi eq, %arg2, %c0_i32_12 : i32
    %16 = arith.extui %15 : i1 to i32
    %c0_i32_13 = arith.constant 0 : i32
    %17 = arith.cmpi ne, %16, %c0_i32_13 : i32
    scf.if %17 {
      %c0_14 = arith.constant 0 : index
      %c0_15 = arith.constant 0 : index
      %18 = vector.load %arg6[%c0_14, %c0_15] : memref<8x1xf32, #tpu.memory_space<vmem>>, vector<8x1xf32>
      %c0_16 = arith.constant 0 : index
      %c0_17 = arith.constant 0 : index
      %c0_18 = arith.constant 0 : index
      %c0_19 = arith.constant 0 : index
      %19 = vector.load %arg4[%c0_16, %c0_17, %c0_18, %c0_19] : memref<1x1x8x1xf32, #tpu.memory_space<vmem>>, vector<1x1x8x1xf32>
      %20 = vector.shape_cast %19 : vector<1x1x8x1xf32> to vector<8x1xf32>
      %21 = vector.shape_cast %18 : vector<8x1xf32> to vector<1x1x8x1xf32>
      tpu.vector_store %arg4[%c0_16, %c0_17, %c0_18, %c0_19], %21 {strides = array<i32>} : memref<1x1x8x1xf32, #tpu.memory_space<vmem>>, vector<1x1x8x1xf32>,
      %c0_20 = arith.constant 0 : index
      %c0_21 = arith.constant 0 : index
      %22 = vector.load %arg7[%c0_20, %c0_21] : memref<8x1xf32, #tpu.memory_space<vmem>>, vector<8x1xf32>
      %c0_22 = arith.constant 0 : index
      %c0_23 = arith.constant 0 : index
      %c0_24 = arith.constant 0 : index
      %c0_25 = arith.constant 0 : index
      %23 = vector.load %arg5[%c0_22, %c0_23, %c0_24, %c0_25] : memref<1x1x8x1xf32, #tpu.memory_space<vmem>>, vector<1x1x8x1xf32>
      %24 = vector.shape_cast %23 : vector<1x1x8x1xf32> to vector<8x1xf32>
      %25 = vector.shape_cast %22 : vector<8x1xf32> to vector<1x1x8x1xf32>
      tpu.vector_store %arg5[%c0_22, %c0_23, %c0_24, %c0_25], %25 {strides = array<i32>} : memref<1x1x8x1xf32, #tpu.memory_space<vmem>>, vector<1x1x8x1xf32>,
    } else {
    }
    return
  }
  func.func @transform_0(%arg0: i32, %arg1: i32, %arg2: i32) -> (i32, i32, i32) {
    %c1_i32 = arith.constant 1 : i32
    %0 = arith.muli %arg1, %c1_i32 : i32
    %1 = arith.addi %0, %arg2 : i32
    %c0_i32 = arith.constant 0 : i32
    %c0_i32_0 = arith.constant 0 : i32
    return %arg0, %c0_i32, %1 : i32, i32, i32
  }
  func.func @transform_1(%arg0: i32, %arg1: i32, %arg2: i32) -> (i32, i32, i32, i32) {
    %c0_i32 = arith.constant 0 : i32
    %c0_i32_0 = arith.constant 0 : i32
    %c0_i32_1 = arith.constant 0 : i32
    return %arg0, %arg1, %c0_i32, %c0_i32_0 : i32, i32, i32, i32
  }
  func.func @transform_2(%arg0: i32, %arg1: i32, %arg2: i32) -> (i32, i32, i32, i32) {
    %c0_i32 = arith.constant 0 : i32
    %c0_i32_0 = arith.constant 0 : i32
    %c0_i32_1 = arith.constant 0 : i32
    return %arg0, %arg1, %c0_i32, %c0_i32_0 : i32, i32, i32, i32
  }
}

</mosaic_0001>

<llo_original>
// kernel: tpu_custom_call.1
$region0: #{tpu_custom_call.1}
  #allocation0 [shape = 'u32[]', space=smem, size = 0x4, offset = 0x4, fixed_abs, tag = 'smem constant byte address 0x4 - core index']
  #allocation1 [shape = 'u32[72,128]{1,0:T(1,128)}', space=vmem, size = 0x9000, scoped, tag = 'internal scratch']
  #allocation2 [shape = 'f32[8,1]{1,0:T(8,128)}', space=vmem, size = 0x1000, scoped, tag = 'scratch operand']
  #allocation3 [shape = 'f32[8,1]{1,0:T(8,128)}', space=vmem, size = 0x1000, scoped, tag = 'scratch operand']
  %s0 = inlined_call_operand.hbm [shape: f32[2,8,256], index: 0, kind: input, shape index: {}]
  %s1 = inlined_call_operand.vmem [shape: f32[2,1,8,1], index: 1, kind: output, shape index: {0}]
  %s2 = inlined_call_operand.vmem [shape: f32[2,1,8,1], index: 2, kind: output, shape index: {1}]
  %3 = xla_tuple %s1, %s2
  %s4 = sld [smem:[#allocation0]]
  $region57: #{tpu_custom_call.1} parent=0
    _
  %s6 = ssub.s32 1, %s4
  %s7 = scalar_select 0, %s6, %s4
  $region1: #{tpu_custom_call.1} parent=0
    #allocation4 [shape = 'u8[16384]{0}', space=vmem, size = 0x4000, scoped, tag = 'input window, operand 0']
    #allocation5 [shape = 's32[2]{0}', space=sflag, size = 0x8, scoped, tag = 'scoped memory for tpu_custom_call.1']
    %8 = vsyncpa [#allocation5], 0
    %s9 = scalar_lea.sflag [#allocation5], 1
    %10 = vsyncpa %s9, 0
    loop: start=0, step=1, limit=4
    $region2: #{tpu_custom_call.1} parent=1 // loop_pre_header
      _
    $region3: #{tpu_custom_call.1} parent=1 // loop_header
      %s12 = sphi 0, %s16
      %p13 = scmp.ge.s32.totalorder %s12, 4
      %s19 = sphi 0, %s38
      %s20 = sphi 0, %s34
      %s21 = sphi 0, %s30
      %s22 = sphi 0, %s19
      %s23 = sphi 0, %s20
      %s24 = sphi 0, %s21
      %s25 = sphi 0, %s22
      %s26 = sphi 0, %s23
      %s27 = sphi 0, %s24
      %s45 = sphi 0, %s47
      %s48 = sphi 0, %s45
      %s49 = sphi 0, %s48
      %s65 = sphi 0, %s49
      %s73 = sphi 0, %s75
      %s76 = sphi 0, %s73
      %s77 = sphi 0, %s76
      %s93 = sphi 0, %s77
      %s101 = sphi 0, %s103
      %s104 = sphi 0, %s101
      %s105 = sphi 0, %s104
      %s121 = sphi 0, %s105
    $region4: #{tpu_custom_call.1} parent=1 // loop_header_branch
      %15 = sbr.rel (%p13) target = $region8
    $region5: #{tpu_custom_call.1} parent=1 // loop_body
      %s17 = ssub.s32 %s12, 1
      %s18 = ssub.s32 %s12, 2
      %s28 = sadd.s32 1, %s21
      %p29 = scmp.ge.s32.totalorder %s28, 1
      %s30 = scalar_select %p29, 0, %s28
      %s31 = sadd.s32 1, %s20
      %s32 = scalar_select %p29, %s31, %s20
      %p33 = scmp.ge.s32.totalorder %s32, 1
      %s34 = scalar_select %p33, 0, %s32
      %s35 = sadd.s32 1, %s19
      %s36 = scalar_select %p33, %s35, %s19
      %p37 = scmp.ge.s32.totalorder %s36, 2
      %s38 = scalar_select %p37, 0, %s36
      %s39 = sadd.s32 %s20, %s21
      %s40 = sadd.s32 %s34, %s30
      %s41 = ssub.s32 %s19, %s38
      %s42 = ssub.s32 %s39, %s40
      %s43 = sor.u32 %s41, %s42
      %p44 = scmp.eq.s32.totalorder %s43, 0
      %s46 = sadd.s32 %s45, 1
      %s47 = scalar_select %p44, %s45, %s46
      %p50 = pneg %p44
      %p51 = scmp.eq.s32.totalorder %s12, 1
      %p52 = por %p50, %p51
      %p53 = scmp.ne.s32.totalorder %s45, %s48
      %p54 = scmp.eq.s32.totalorder %s12, 0
      %p55 = por %p53, %p54
      %p56 = scmp.ne.s32.totalorder %s45, %s48
      %p57 = scmp.eq.s32.totalorder %s17, 1
      %p58 = por %p56, %p57
      %p59 = scmp.ne.s32.totalorder %s48, %s49
      %p60 = scmp.eq.s32.totalorder %s17, 0
      %p61 = por %p59, %p60
      %p62 = scmp.ne.s32.totalorder %s48, %s49
      %p63 = scmp.eq.s32.totalorder %s18, 1
      %p64 = por %p62, %p63
      %p66 = scmp.ne.s32.totalorder %s49, %s65
      %p67 = scmp.eq.s32.totalorder %s18, 0
      %p68 = por %p66, %p67
      %s69 = ssub.s32 %s19, %s38
      %s70 = ssub.s32 %s20, %s34
      %s71 = sor.u32 %s69, %s70
      %p72 = scmp.eq.s32.totalorder %s71, 0
      %s74 = sadd.s32 %s73, 1
      %s75 = scalar_select %p72, %s73, %s74
      %p78 = pneg %p72
      %p79 = scmp.eq.s32.totalorder %s12, 1
      %p80 = por %p78, %p79
      %p81 = scmp.ne.s32.totalorder %s73, %s76
      %p82 = scmp.eq.s32.totalorder %s12, 0
      %p83 = por %p81, %p82
      %p84 = scmp.ne.s32.totalorder %s73, %s76
      %p85 = scmp.eq.s32.totalorder %s17, 1
      %p86 = por %p84, %p85
      %p87 = scmp.ne.s32.totalorder %s76, %s77
      %p88 = scmp.eq.s32.totalorder %s17, 0
      %p89 = por %p87, %p88
      %p90 = scmp.ne.s32.totalorder %s76, %s77
      %p91 = scmp.eq.s32.totalorder %s18, 1
      %p92 = por %p90, %p91
      %p94 = scmp.ne.s32.totalorder %s77, %s93
      %p95 = scmp.eq.s32.totalorder %s18, 0
      %p96 = por %p94, %p95
      %s97 = ssub.s32 %s19, %s38
      %s98 = ssub.s32 %s20, %s34
      %s99 = sor.u32 %s97, %s98
      %p100 = scmp.eq.s32.totalorder %s99, 0
      %s102 = sadd.s32 %s101, 1
      %s103 = scalar_select %p100, %s101, %s102
      %p106 = pneg %p100
      %p107 = scmp.eq.s32.totalorder %s12, 1
      %p108 = por %p106, %p107
      %p109 = scmp.ne.s32.totalorder %s101, %s104
      %p110 = scmp.eq.s32.totalorder %s12, 0
      %p111 = por %p109, %p110
      %p112 = scmp.ne.s32.totalorder %s101, %s104
      %p113 = scmp.eq.s32.totalorder %s17, 1
      %p114 = por %p112, %p113
      %p115 = scmp.ne.s32.totalorder %s104, %s105
      %p116 = scmp.eq.s32.totalorder %s17, 0
      %p117 = por %p115, %p116
      %p118 = scmp.ne.s32.totalorder %s104, %s105
      %p119 = scmp.eq.s32.totalorder %s18, 1
      %p120 = por %p118, %p119
      %p122 = scmp.ne.s32.totalorder %s105, %s121
      %p123 = scmp.eq.s32.totalorder %s18, 0
      %p124 = por %p122, %p123
      %p125 = scmp.le.s32.totalorder 1, %s12
      %p126 = scmp.lt.s32.totalorder %s12, 3
      %p127 = pnand %p125, %p126
      %p128 = pneg %p127
      // Predicated region
      $region9: #{tpu_custom_call.1} parent=5 // pred_check
        _
      $region10: #{tpu_custom_call.1} parent=5 // pred_check_branch
        %130 = sbr.rel (%p127) target = $region12
      $region11: #{tpu_custom_call.1} parent=5 // pred_region
        %s131 = ssub.s32 %s12, 1
      $region12: #{tpu_custom_call.1} parent=5 // pred_fallthru
        _
      %p132 = scmp.lt.s32.totalorder %s12, 2
      // Predicated region
      $region13: #{tpu_custom_call.1} parent=5 // pred_check
        %p133 = pneg %p132
      $region14: #{tpu_custom_call.1} parent=5 // pred_check_branch
        %135 = sbr.rel (%p133) target = $region16
      $region15: #{tpu_custom_call.1} parent=5 // pred_region
        // Predicated region
        $region17: #{tpu_custom_call.1} parent=15 // pred_check
          %p136 = pneg %p55
        $region18: #{tpu_custom_call.1} parent=15 // pred_check_branch
          %138 = sbr.rel (%p136) target = $region20
        $region19: #{tpu_custom_call.1} parent=15 // pred_region
          %s139 = sand.u32 %s45, 1
          %s140 = scalar_lea.sflag [#allocation5], %s139
          %s141 = sand.u32 %s45, 1
          %s142 = smul.addr %s141, 16
          %s143 = scalar_lea.vmem [#allocation4], %s142
          %s144 = sadd.s32 %s20, %s21
          %s145 = smul.u32 2, %s144
          %147 = vsyncadd %s140, 0
          %s148 = smul.addr %s19, 2
          %s149 = sadd.s32 %s145, %s148
          %s150 = smul.addr %s149, 8
          %s151 = scalar_lea.hbm %s0, %s150
          %s153 = sshll.u32 %s151, 4
          %s154 = int_to_ptr.hbm [resolvable:$true] %s153
          %s155 = sshll.u32 %s143, 4
          %s156 = int_to_ptr.vmem [resolvable:$true] %s155
          %158 = dma.hbm_to_vmem [thread:$0]  %s154, 256, %s156, %s140
        $region20: #{tpu_custom_call.1} parent=15 // pred_fallthru
          _
      $region16: #{tpu_custom_call.1} parent=5 // pred_fallthru
        _
      %p159 = scmp.le.s32.totalorder 1, %s12
      %p160 = scmp.lt.s32.totalorder %s12, 3
      %p161 = pnand %p159, %p160
      %p162 = pneg %p161
      // Predicated region
      $region21: #{tpu_custom_call.1} parent=5 // pred_check
        _
      $region22: #{tpu_custom_call.1} parent=5 // pred_check_branch
        %164 = sbr.rel (%p161) target = $region24
      $region23: #{tpu_custom_call.1} parent=5 // pred_region
        %s165 = ssub.s32 %s12, 1
        %s166 = sand.u32 %s48, 1
        %s167 = scalar_lea.sflag [#allocation5], %s166
        %s168 = sand.u32 %s48, 1
        %s169 = smul.addr %s168, 16
        %s170 = scalar_lea.vmem [#allocation4], %s169
        // Predicated region
        $region25: #{tpu_custom_call.1} parent=23 // pred_check
          %p171 = pneg %p61
        $region26: #{tpu_custom_call.1} parent=23 // pred_check_branch
          %173 = sbr.rel (%p171) target = $region28
        $region27: #{tpu_custom_call.1} parent=23 // pred_region
          %175 = dma.done %s167, 256
        $region28: #{tpu_custom_call.1} parent=23 // pred_fallthru
          _
        %s176 = sand.u32 %s48, 1
        %s177 = scalar_lea.sflag [#allocation5], %s176
        %s178 = sand.u32 %s48, 1
        %s179 = smul.addr %s178, 16
        %s180 = scalar_lea.vmem [#allocation4], %s179
        %p181 = pneg %p61
        %p182 = pneg %p58
        %p183 = pneg %p89
        %p184 = pneg %p86
        %p185 = scmp.lt.s32.totalorder %s22, 1
        %s186 = scalar_select %p185, %s22, 1
        %p187 = scmp.lt.s32.totalorder %s23, 0
        %s188 = scalar_select %p187, %s23, 0
        %s189 = sadd.s32 %s188, %s186
        %s190 = smul.addr %s189, 8
        %s191 = scalar_lea.vmem %s1, %s190
        %p192 = pneg %p117
        %p193 = pneg %p114
        %p194 = scmp.lt.s32.totalorder %s22, 1
        %s195 = scalar_select %p194, %s22, 1
        %p196 = scmp.lt.s32.totalorder %s23, 0
        %s197 = scalar_select %p196, %s23, 0
        %s198 = sadd.s32 %s197, %s195
        %s199 = smul.addr %s198, 8
        %s200 = scalar_lea.vmem %s2, %s199
        %s201 = sadd.s32 %s23, %s24
        %s202 = smul.u32 2, %s201
        %p203 = scmp.lt.s32.totalorder %s22, 1
        %s204 = scalar_select %p203, %s22, 1
        %p205 = scmp.lt.s32.totalorder %s23, 0
        %s206 = scalar_select %p205, %s23, 0
        %s207 = sadd.s32 %s206, %s204
        %s208 = smul.addr %s207, 8
        %s209 = scalar_lea.vmem %s1, %s208
        %p210 = scmp.lt.s32.totalorder %s22, 1
        %s211 = scalar_select %p210, %s22, 1
        %p212 = scmp.lt.s32.totalorder %s23, 0
        %s213 = scalar_select %p212, %s23, 0
        %s214 = sadd.s32 %s213, %s211
        %s215 = smul.addr %s214, 8
        %s216 = scalar_lea.vmem %s2, %s215
        %p217 = scmp.eq.s32.totalorder %s24, 0
        // Predicated region
        $region29: #{tpu_custom_call.1} parent=23 // pred_check
          %p218 = pneg %p217
        $region30: #{tpu_custom_call.1} parent=23 // pred_check_branch
          %220 = sbr.rel (%p218) target = $region32
        $region31: #{tpu_custom_call.1} parent=23 // pred_region
          %vm221 = vcmask 7168
          %222 = vst.msk [vmem:[#allocation2] sm:$0xff] %vm221, 0.0
          %223 = vst.msk [vmem:[#allocation3] sm:$0xff] %vm221, -inf
        $region32: #{tpu_custom_call.1} parent=23 // pred_fallthru
          _
        %v224 = vld [vmem:[%s170] sm:$0xff]
        %v225 = vld [vmem:[%s170 + $0x8] sm:$0xff]
        %v226 = vld [vmem:[#allocation2] sm:$0xff]
        %v227 = vadd.f32 %v224, %v225
        %228 = vadd.xlane.f32.xlu0 %v227
        %v229 = vpop.xlane.xlu0 %228
        %v230 = vadd.f32 %v226, %v229
        %vm231 = vcmask 7168
        %232 = vst.msk [vmem:[#allocation2] sm:$0xff] %vm231, %v230
        %v233 = vld [vmem:[#allocation3] sm:$0xff]
        %v234 = vmax.f32 %v224, %v225
        %235 = vmax.xlane.f32.xlu0 %v234
        %v236 = vpop.xlane.xlu0 %235
        %v237 = vmax.f32 %v233, %v236
        %238 = vst.msk [vmem:[#allocation3] sm:$0xff] %vm231, %v237
        // Predicated region
        $region33: #{tpu_custom_call.1} parent=23 // pred_check
          %p239 = pneg %p217
        $region34: #{tpu_custom_call.1} parent=23 // pred_check_branch
          %241 = sbr.rel (%p239) target = $region36
        $region35: #{tpu_custom_call.1} parent=23 // pred_region
          %v242 = vld [vmem:[#allocation2] sm:$0xff]
          %243 = vst.msk [vmem:[%s209] sm:$0xff] %vm231, %v242
          %v244 = vld [vmem:[#allocation3] sm:$0xff]
          %245 = vst.msk [vmem:[%s216] sm:$0xff] %vm231, %v244
        $region36: #{tpu_custom_call.1} parent=23 // pred_fallthru
          _
        %p246 = scmp.lt.s32.totalorder %s22, 1
        %s247 = scalar_select %p246, %s22, 1
        %p248 = scmp.lt.s32.totalorder %s23, 0
        %s249 = scalar_select %p248, %s23, 0
        %s250 = sadd.s32 %s249, %s247
        %s251 = smul.addr %s250, 8
        %s252 = scalar_lea.vmem %s1, %s251
        %p253 = scmp.lt.s32.totalorder %s22, 1
        %s254 = scalar_select %p253, %s22, 1
        %p255 = scmp.lt.s32.totalorder %s23, 0
        %s256 = scalar_select %p255, %s23, 0
        %s257 = sadd.s32 %s256, %s254
        %s258 = smul.addr %s257, 8
        %s259 = scalar_lea.vmem %s2, %s258
        // Predicated region
        $region37: #{tpu_custom_call.1} parent=23 // pred_check
          %p260 = pneg %p86
        $region38: #{tpu_custom_call.1} parent=23 // pred_check_branch
          %262 = sbr.rel (%p260) target = $region40
        $region39: #{tpu_custom_call.1} parent=23 // pred_region
          _
        $region40: #{tpu_custom_call.1} parent=23 // pred_fallthru
          _
        // Predicated region
        $region41: #{tpu_custom_call.1} parent=23 // pred_check
          %p263 = pneg %p114
        $region42: #{tpu_custom_call.1} parent=23 // pred_check_branch
          %265 = sbr.rel (%p263) target = $region44
        $region43: #{tpu_custom_call.1} parent=23 // pred_region
          _
        $region44: #{tpu_custom_call.1} parent=23 // pred_fallthru
          _
      $region24: #{tpu_custom_call.1} parent=5 // pred_fallthru
        _
      %p266 = scmp.le.s32.totalorder 2, %s12
      // Predicated region
      $region45: #{tpu_custom_call.1} parent=5 // pred_check
        %p267 = pneg %p266
      $region46: #{tpu_custom_call.1} parent=5 // pred_check_branch
        %269 = sbr.rel (%p267) target = $region48
      $region47: #{tpu_custom_call.1} parent=5 // pred_region
        %s270 = ssub.s32 %s12, 2
        // Predicated region
        $region49: #{tpu_custom_call.1} parent=47 // pred_check
          %p271 = pneg %p92
        $region50: #{tpu_custom_call.1} parent=47 // pred_check_branch
          %273 = sbr.rel (%p271) target = $region52
        $region51: #{tpu_custom_call.1} parent=47 // pred_region
          %p274 = scmp.lt.s32.totalorder %s25, 1
          %s275 = scalar_select %p274, %s25, 1
          %p276 = scmp.lt.s32.totalorder %s26, 0
          %s277 = scalar_select %p276, %s26, 0
          %s278 = sadd.s32 %s277, %s275
          %s279 = smul.addr %s278, 8
          %s280 = scalar_lea.vmem %s1, %s279
        $region52: #{tpu_custom_call.1} parent=47 // pred_fallthru
          _
        // Predicated region
        $region53: #{tpu_custom_call.1} parent=47 // pred_check
          %p281 = pneg %p120
        $region54: #{tpu_custom_call.1} parent=47 // pred_check_branch
          %283 = sbr.rel (%p281) target = $region56
        $region55: #{tpu_custom_call.1} parent=47 // pred_region
          %p284 = scmp.lt.s32.totalorder %s25, 1
          %s285 = scalar_select %p284, %s25, 1
          %p286 = scmp.lt.s32.totalorder %s26, 0
          %s287 = scalar_select %p286, %s26, 0
          %s288 = sadd.s32 %s287, %s285
          %s289 = smul.addr %s288, 8
          %s290 = scalar_lea.vmem %s2, %s289
        $region56: #{tpu_custom_call.1} parent=47 // pred_fallthru
          _
      $region48: #{tpu_custom_call.1} parent=5 // pred_fallthru
        _
    $region6: #{tpu_custom_call.1} parent=1 // loop_footer
      %s16 = sadd.s32 1, %s12
    $region7: #{tpu_custom_call.1} parent=1 // loop_footer_branch
      %11 = sbr.rel target = $region3
    $region8: #{tpu_custom_call.1} parent=1 // loop_exit
      _
    %291 = vsyncpa [#allocation5], 1
    %s292 = scalar_lea.sflag [#allocation5], 1
    %293 = vsyncpa %s292, 1

</llo_original>
